<compile_context>
chip_gen: v6e
topology: v6e:2x2x1
jax: 0.10.0
libtpu: 0.0.40
codegen_flags: <defaults>
</compile_context>

<pallas_src>
import functools

import numpy as np
import jax
import jax.numpy as jnp
from jax import lax
from jax.experimental import pallas as pl
from jax.experimental.pallas import tpu as pltpu

LANES = 128
SUBLANES = 8
# (4096, 128) f32 tile = 2 MiB per stream per buffer.
MAX_BLOCK_ROWS = 4096


def _bmf_kernel(gid_lo_ref, gid_hi_ref, off_ref, em_ref, i0_ref, k_ref, b_ref,
                q_ref, vpd_ref, o_ref, *, num):
    """One (block_rows, 128) tile of observations; params expanded in-kernel."""
    i = pl.program_id(0)
    g_lo = gid_lo_ref[i]          # group of the first element of this block
    g_hi = gid_hi_ref[i]          # group of the last valid element of this block

    q = q_ref[...]
    vpd = vpd_ref[...]

    def emit(em, i0, kk, bb):
        q_i0 = q + i0
        denom = bb * q + kk + q_i0 * vpd
        # EUP approximate reciprocal + one Newton-Raphson step: ~1e-7 relative
        # error, keeps the expensive part of the divide off the VALU slot.
        r = pl.reciprocal(denom, approx=True)
        r = r * (2.0 - denom * r)
        o_ref[...] = (em * q_i0) * r

    @pl.when(g_lo == g_hi)
    def _uniform():
        # Common case: whole block belongs to one group -> broadcast scalars
        # read from SMEM with a dynamic index.  Pure streaming, no VPU chain.
        emit(em_ref[g_lo], i0_ref[g_lo], k_ref[g_lo], b_ref[g_lo])

    @pl.when(g_lo != g_hi)
    def _boundary():
        # At most num-1 blocks straddle a group boundary: rebuild per-element
        # params with a where-chain against the global element index.
        block_rows, lanes = q_ref.shape
        shape = (block_rows, lanes)
        base = i * (block_rows * lanes)            # int32-safe: N < 2**31 asserted
        rid = lax.broadcasted_iota(jnp.int32, shape, 0)
        lid = lax.broadcasted_iota(jnp.int32, shape, 1)
        idx = base + rid * lanes + lid
        em = jnp.full(shape, em_ref[0], jnp.float32)
        i0 = jnp.full(shape, i0_ref[0], jnp.float32)
        kk = jnp.full(shape, k_ref[0], jnp.float32)
        bb = jnp.full(shape, b_ref[0], jnp.float32)
        for g in range(1, num):                    # static unroll; num is small
            ge = idx >= off_ref[g]
            em = jnp.where(ge, em_ref[g], em)
            i0 = jnp.where(ge, i0_ref[g], i0)
            kk = jnp.where(ge, k_ref[g], kk)
            bb = jnp.where(ge, b_ref[g], bb)
        emit(em, i0, kk, bb)


def _choose_block_rows(rows, max_block_rows):
    """Largest block that fits max_block_rows, is a multiple of 8, and yields
    >= 2 grid steps whenever possible (so v7x's two TensorCores both get work)."""
    if rows <= SUBLANES:
        return rows                                # single block = full dim
    half = -(-rows // 2)                           # ceil(rows / 2)
    half = -(-half // SUBLANES) * SUBLANES         # round up to a multiple of 8
    return min(max_block_rows, half)


def bmf_forward_2d(Em, i0, k, b, q2, vpd2, lengths, *,
                   max_block_rows=MAX_BLOCK_ROWS):
    """Core entry point: Q/VPD already in lane-major (rows, 128) f32 layout.

    No padding / slicing copies happen here, so HBM traffic is exactly 12 B per
    observation (Q read + VPD read + gs write).  Returns the (rows, 128) result;
    elements past sum(lengths) are junk the caller ignores.
    """
    lengths = np.asarray(lengths, dtype=np.int64)
    num = int(lengths.shape[0])
    N = int(lengths.sum())
    rows, lanes = q2.shape
    assert lanes == LANES and vpd2.shape == (rows, LANES)
    assert 1 <= N <= rows * LANES
    assert N < 2 ** 31, "int32 element indices would overflow"

    block_rows = _choose_block_rows(rows, max_block_rows)
    nblocks = pl.cdiv(rows, block_rows)
    block_elems = block_rows * LANES

    # Host-side (static) per-group offsets and per-block group-id tables -> SMEM.
    offsets = np.zeros((num,), dtype=np.int64)
    offsets[1:] = np.cumsum(lengths)[:-1]
    starts = np.minimum(np.arange(nblocks, dtype=np.int64) * block_elems, N - 1)
    ends = np.minimum(
        np.arange(1, nblocks + 1, dtype=np.int64) * block_elems - 1, N - 1)
    gid_lo = np.searchsorted(offsets, starts, side="right") - 1
    gid_hi = np.searchsorted(offsets, ends, side="right") - 1

    smem = pl.BlockSpec(memory_space=pltpu.MemorySpace.SMEM)
    tile = pl.BlockSpec((block_rows, LANES), lambda i: (i, 0))

    out = pl.pallas_call(
        functools.partial(_bmf_kernel, num=num),
        out_shape=jax.ShapeDtypeStruct((rows, LANES), jnp.float32),
        grid=(nblocks,),
        in_specs=[
            smem,   # gid_lo   (nblocks,) int32
            smem,   # gid_hi   (nblocks,) int32
            smem,   # offsets  (num,)     int32
            smem,   # Em       (num,)
            smem,   # i0       (num,)
            smem,   # k        (num,)
            smem,   # b        (num,)
            tile,   # Q        (rows, 128)
            tile,   # VPD      (rows, 128)
        ],
        out_specs=tile,
        compiler_params=pltpu.CompilerParams(
            dimension_semantics=("parallel",),
            # 3 streams x 2 buffers x 2 MiB = 12 MiB; raise the scoped limit so
            # the 4096-row blocks also fit v5e's 16 MiB default.
            vmem_limit_bytes=32 * 1024 * 1024),
    )(jnp.asarray(gid_lo, jnp.int32),
      jnp.asarray(gid_hi, jnp.int32),
      jnp.asarray(offsets, jnp.int32),
      jnp.asarray(Em, jnp.float32), jnp.asarray(i0, jnp.float32),
      jnp.asarray(k, jnp.float32), jnp.asarray(b, jnp.float32),
      q2, vpd2)
    return out


def bmf_forward(Em, i0, k, b, Q, VPD, lengths, *, max_block_rows=MAX_BLOCK_ROWS):
    """Convenience wrapper for flat (N,) drivers.

    Pads only to a multiple of 128 lanes (not a full 1024-element tile) and only
    when N is ragged; with 128-aligned N there are no extra HBM copies at all.
    Production callers should keep drivers in the (rows, 128) layout and call
    bmf_forward_2d directly to skip the pad / tail-slice entirely.
    """
    N = int(np.asarray(lengths, dtype=np.int64).sum())
    pad = (-N) % LANES

    def as_2d(x):
        x = jnp.asarray(x, jnp.float32)
        if pad:
            x = jnp.pad(x, (0, pad))
        return x.reshape(-1, LANES)

    out = bmf_forward_2d(Em, i0, k, b, as_2d(Q), as_2d(VPD), lengths,
                         max_block_rows=max_block_rows)
    flat = out.reshape(-1)
    # Padded tail lanes hold gs computed with Q = VPD = 0 and the last group's
    # params (finite since k >> 0); they are dropped here.
    return flat[:N] if pad else flat


if __name__ == "__main__":
    key = jax.random.PRNGKey(0)
    k_q, k_vpd = jax.random.split(key)

    # Small synthetic "scd" configuration: 5 groups, 3000 observations.
    lengths = [700, 950, 137, 800, 413]
    num = len(lengths)
    N = int(np.sum(lengths))

    # Module parameters (perturbed per group so the fused repeat_interleave
    # is actually exercised).
    gidx = np.arange(num, dtype=np.float32)
    Em = jnp.asarray(1.0 + 0.1 * gidx)        # nn.Parameter(ones(num))
    i0 = jnp.asarray(10.0 + gidx)             # nn.Parameter(ones(num) * 10)
    kp = jnp.asarray(10000.0 + 100.0 * gidx)  # nn.Parameter(ones(num) * 10000)
    b = jnp.asarray(10.0 + gidx)              # nn.Parameter(ones(num) * 10)

    # Drivers from scd: light (Q) and vapour-pressure deficit (VPD).
    Q = jax.random.uniform(k_q, (N,), minval=50.0, maxval=2000.0,
                           dtype=jnp.float32)
    VPD = jax.random.uniform(k_vpd, (N,), minval=0.5, maxval=3.5,
                             dtype=jnp.float32)

    # Pure-NumPy reference.
    def reference(Em_, i0_, k_, b_, lengths_):
        gids = np.repeat(np.arange(len(lengths_)), lengths_)
        Em_r = np.asarray(Em_)[gids]
        i0_r = np.asarray(i0_)[gids]
        k_r = np.asarray(k_)[gids]
        b_r = np.asarray(b_)[gids]
        Qn = np.asarray(Q)
        Vn = np.asarray(VPD)
        Q_i0 = Qn + i0_r
        denom = b_r * Qn + k_r + Q_i0 * Vn
        return Em_r * Q_i0 / denom

    # 1) Default (large-block) run: single-group-boundary blocks exercised.
    gs = jax.block_until_ready(bmf_forward(Em, i0, kp, b, Q, VPD, lengths))
    np.testing.assert_allclose(np.asarray(gs), reference(Em, i0, kp, b, lengths),
                               rtol=1e-5, atol=1e-6)

    # 2) Small-block run: multi-step grid + ragged 128-padded tail.
    gs2 = jax.block_until_ready(
        bmf_forward(Em, i0, kp, b, Q, VPD, lengths, max_block_rows=8))
    np.testing.assert_allclose(np.asarray(gs2), reference(Em, i0, kp, b, lengths),
                               rtol=1e-5, atol=1e-6)

    # 3) Block-aligned groups: exercises the uniform (per-block scalar) fast path
    #    with dynamic SMEM parameter indexing.
    lengths_u = [1024, 1024, 952]
    Em_u = jnp.asarray([1.0, 1.5, 2.0], jnp.float32)
    i0_u = jnp.asarray([10.0, 11.0, 12.0], jnp.float32)
    k_u = jnp.asarray([10000.0, 10100.0, 10200.0], jnp.float32)
    b_u = jnp.asarray([10.0, 11.0, 12.0], jnp.float32)
    gs3 = jax.block_until_ready(
        bmf_forward(Em_u, i0_u, k_u, b_u, Q, VPD, lengths_u, max_block_rows=8))
    np.testing.assert_allclose(np.asarray(gs3),
                               reference(Em_u, i0_u, k_u, b_u, lengths_u),
                               rtol=1e-5, atol=1e-6)

    print("KERNEL_OK")
</pallas_src>

<mosaic_0001>
module attributes {stable_mosaic.version = 11 : i64} {
  func.func @_bmf_kernel(%arg0: i32, %arg1: memref<2xi32, #tpu.memory_space<smem>>, %arg2: memref<2xi32, #tpu.memory_space<smem>>, %arg3: memref<5xi32, #tpu.memory_space<smem>>, %arg4: memref<5xf32, #tpu.memory_space<smem>>, %arg5: memref<5xf32, #tpu.memory_space<smem>>, %arg6: memref<5xf32, #tpu.memory_space<smem>>, %arg7: memref<5xf32, #tpu.memory_space<smem>>, %arg8: memref<16x128xf32, #tpu.memory_space<vmem>>, %arg9: memref<16x128xf32, #tpu.memory_space<vmem>>, %arg10: memref<16x128xf32, #tpu.memory_space<vmem>>) attributes {dimension_semantics = [#tpu.dimension_semantics<parallel>], iteration_bounds = array<i64: 2>, scalar_prefetch = 0 : i64, scratch_operands = 0 : i64, tpu.core_type = #tpu.core_type<tc>, window_params = [{transform_indices = @transform_0, window_bounds = array<i64: 2>}, {transform_indices = @transform_1, window_bounds = array<i64: 2>}, {transform_indices = @transform_2, window_bounds = array<i64: 5>}, {transform_indices = @transform_3, window_bounds = array<i64: 5>}, {transform_indices = @transform_4, window_bounds = array<i64: 5>}, {transform_indices = @transform_5, window_bounds = array<i64: 5>}, {transform_indices = @transform_6, window_bounds = array<i64: 5>}, {transform_indices = @transform_7, window_bounds = array<i64: 16, 128>}, {transform_indices = @transform_8, window_bounds = array<i64: 16, 128>}, {transform_indices = @transform_9, window_bounds = array<i64: 16, 128>}]} {
    %0 = arith.index_cast %arg0 : i32 to index
    %1 = memref.load %arg1[%0] : memref<2xi32, #tpu.memory_space<smem>>
    %2 = arith.index_cast %arg0 : i32 to index
    %3 = memref.load %arg2[%2] : memref<2xi32, #tpu.memory_space<smem>>
    %c0 = arith.constant 0 : index
    %c0_0 = arith.constant 0 : index
    %4 = vector.load %arg8[%c0, %c0_0] : memref<16x128xf32, #tpu.memory_space<vmem>>, vector<16x128xf32>
    %c0_1 = arith.constant 0 : index
    %c0_2 = arith.constant 0 : index
    %5 = vector.load %arg9[%c0_1, %c0_2] : memref<16x128xf32, #tpu.memory_space<vmem>>, vector<16x128xf32>
    %6 = arith.cmpi eq, %1, %3 : i32
    %7 = arith.extui %6 : i1 to i32
    %c0_i32 = arith.constant 0 : i32
    %8 = arith.cmpi ne, %7, %c0_i32 : i32
    scf.if %8 {
      %12 = arith.index_cast %1 : i32 to index
      %13 = memref.load %arg4[%12] : memref<5xf32, #tpu.memory_space<smem>>
      %14 = arith.index_cast %1 : i32 to index
      %15 = memref.load %arg5[%14] : memref<5xf32, #tpu.memory_space<smem>>
      %16 = arith.index_cast %1 : i32 to index
      %17 = memref.load %arg6[%16] : memref<5xf32, #tpu.memory_space<smem>>
      %18 = arith.index_cast %1 : i32 to index
      %19 = memref.load %arg7[%18] : memref<5xf32, #tpu.memory_space<smem>>
      %20 = vector.broadcast %15 : f32 to vector<16x128xf32>
      %21 = arith.addf %4, %20 : vector<16x128xf32>
      %22 = vector.broadcast %19 : f32 to vector<16x128xf32>
      %23 = arith.mulf %22, %4 : vector<16x128xf32>
      %24 = vector.broadcast %17 : f32 to vector<16x128xf32>
      %25 = arith.addf %23, %24 : vector<16x128xf32>
      %26 = arith.mulf %21, %5 : vector<16x128xf32>
      %27 = arith.addf %25, %26 : vector<16x128xf32>
      %28 = tpu.reciprocal %27 {approx = true} : vector<16x128xf32> -> vector<16x128xf32>
      %29 = arith.mulf %27, %28 : vector<16x128xf32>
      %cst = arith.constant 2.000000e+00 : f32
      %30 = vector.broadcast %cst : f32 to vector<16x128xf32>
      %31 = arith.subf %30, %29 : vector<16x128xf32>
      %32 = arith.mulf %28, %31 : vector<16x128xf32>
      %33 = vector.broadcast %13 : f32 to vector<16x128xf32>
      %34 = arith.mulf %33, %21 : vector<16x128xf32>
      %35 = arith.mulf %34, %32 : vector<16x128xf32>
      %c0_4 = arith.constant 0 : index
      %c0_5 = arith.constant 0 : index
      %36 = vector.load %arg10[%c0_4, %c0_5] : memref<16x128xf32, #tpu.memory_space<vmem>>, vector<16x128xf32>
      tpu.vector_store %arg10[%c0_4, %c0_5], %35 {strides = array<i32>} : memref<16x128xf32, #tpu.memory_space<vmem>>, vector<16x128xf32>,
    } else {
    }
    %9 = arith.cmpi ne, %1, %3 : i32
    %10 = arith.extui %9 : i1 to i32
    %c0_i32_3 = arith.constant 0 : i32
    %11 = arith.cmpi ne, %10, %c0_i32_3 : i32
    scf.if %11 {
      %c2048_i32 = arith.constant 2048 : i32
      %12 = arith.muli %arg0, %c2048_i32 : i32
      %13 = tpu.iota {dimensions = array<i32: 0>} : vector<16x128xi32>
      %14 = tpu.iota {dimensions = array<i32: 1>} : vector<16x128xi32>
      %c128_i32 = arith.constant 128 : i32
      %15 = vector.broadcast %c128_i32 : i32 to vector<16x128xi32>
      %16 = arith.muli %13, %15 : vector<16x128xi32>
      %17 = vector.broadcast %12 : i32 to vector<16x128xi32>
      %18 = arith.addi %17, %16 : vector<16x128xi32>
      %19 = arith.addi %18, %14 : vector<16x128xi32>
      %c0_4 = arith.constant 0 : index
      %20 = memref.load %arg4[%c0_4] : memref<5xf32, #tpu.memory_space<smem>>
      %21 = vector.broadcast %20 : f32 to vector<16x128xf32>
      %c0_5 = arith.constant 0 : index
      %22 = memref.load %arg5[%c0_5] : memref<5xf32, #tpu.memory_space<smem>>
      %23 = vector.broadcast %22 : f32 to vector<16x128xf32>
      %c0_6 = arith.constant 0 : index
      %24 = memref.load %arg6[%c0_6] : memref<5xf32, #tpu.memory_space<smem>>
      %25 = vector.broadcast %24 : f32 to vector<16x128xf32>
      %c0_7 = arith.constant 0 : index
      %26 = memref.load %arg7[%c0_7] : memref<5xf32, #tpu.memory_space<smem>>
      %27 = vector.broadcast %26 : f32 to vector<16x128xf32>
      %c1 = arith.constant 1 : index
      %28 = memref.load %arg3[%c1] : memref<5xi32, #tpu.memory_space<smem>>
      %29 = vector.broadcast %28 : i32 to vector<16x128xi32>
      %30 = arith.cmpi sge, %19, %29 : vector<16x128xi32>
      %c1_8 = arith.constant 1 : index
      %31 = memref.load %arg4[%c1_8] : memref<5xf32, #tpu.memory_space<smem>>
      %32 = vector.broadcast %31 : f32 to vector<16x128xf32>
      %33 = arith.select %30, %32, %21 : vector<16x128xi1>, vector<16x128xf32>
      %c1_9 = arith.constant 1 : index
      %34 = memref.load %arg5[%c1_9] : memref<5xf32, #tpu.memory_space<smem>>
      %35 = vector.broadcast %34 : f32 to vector<16x128xf32>
      %36 = arith.select %30, %35, %23 : vector<16x128xi1>, vector<16x128xf32>
      %c1_10 = arith.constant 1 : index
      %37 = memref.load %arg6[%c1_10] : memref<5xf32, #tpu.memory_space<smem>>
      %38 = vector.broadcast %37 : f32 to vector<16x128xf32>
      %39 = arith.select %30, %38, %25 : vector<16x128xi1>, vector<16x128xf32>
      %c1_11 = arith.constant 1 : index
      %40 = memref.load %arg7[%c1_11] : memref<5xf32, #tpu.memory_space<smem>>
      %41 = vector.broadcast %40 : f32 to vector<16x128xf32>
      %42 = arith.select %30, %41, %27 : vector<16x128xi1>, vector<16x128xf32>
      %c2 = arith.constant 2 : index
      %43 = memref.load %arg3[%c2] : memref<5xi32, #tpu.memory_space<smem>>
      %44 = vector.broadcast %43 : i32 to vector<16x128xi32>
      %45 = arith.cmpi sge, %19, %44 : vector<16x128xi32>
      %c2_12 = arith.constant 2 : index
      %46 = memref.load %arg4[%c2_12] : memref<5xf32, #tpu.memory_space<smem>>
      %47 = vector.broadcast %46 : f32 to vector<16x128xf32>
      %48 = arith.select %45, %47, %33 : vector<16x128xi1>, vector<16x128xf32>
      %c2_13 = arith.constant 2 : index
      %49 = memref.load %arg5[%c2_13] : memref<5xf32, #tpu.memory_space<smem>>
      %50 = vector.broadcast %49 : f32 to vector<16x128xf32>
      %51 = arith.select %45, %50, %36 : vector<16x128xi1>, vector<16x128xf32>
      %c2_14 = arith.constant 2 : index
      %52 = memref.load %arg6[%c2_14] : memref<5xf32, #tpu.memory_space<smem>>
      %53 = vector.broadcast %52 : f32 to vector<16x128xf32>
      %54 = arith.select %45, %53, %39 : vector<16x128xi1>, vector<16x128xf32>
      %c2_15 = arith.constant 2 : index
      %55 = memref.load %arg7[%c2_15] : memref<5xf32, #tpu.memory_space<smem>>
      %56 = vector.broadcast %55 : f32 to vector<16x128xf32>
      %57 = arith.select %45, %56, %42 : vector<16x128xi1>, vector<16x128xf32>
      %c3 = arith.constant 3 : index
      %58 = memref.load %arg3[%c3] : memref<5xi32, #tpu.memory_space<smem>>
      %59 = vector.broadcast %58 : i32 to vector<16x128xi32>
      %60 = arith.cmpi sge, %19, %59 : vector<16x128xi32>
      %c3_16 = arith.constant 3 : index
      %61 = memref.load %arg4[%c3_16] : memref<5xf32, #tpu.memory_space<smem>>
      %62 = vector.broadcast %61 : f32 to vector<16x128xf32>
      %63 = arith.select %60, %62, %48 : vector<16x128xi1>, vector<16x128xf32>
      %c3_17 = arith.constant 3 : index
      %64 = memref.load %arg5[%c3_17] : memref<5xf32, #tpu.memory_space<smem>>
      %65 = vector.broadcast %64 : f32 to vector<16x128xf32>
      %66 = arith.select %60, %65, %51 : vector<16x128xi1>, vector<16x128xf32>
      %c3_18 = arith.constant 3 : index
      %67 = memref.load %arg6[%c3_18] : memref<5xf32, #tpu.memory_space<smem>>
      %68 = vector.broadcast %67 : f32 to vector<16x128xf32>
      %69 = arith.select %60, %68, %54 : vector<16x128xi1>, vector<16x128xf32>
      %c3_19 = arith.constant 3 : index
      %70 = memref.load %arg7[%c3_19] : memref<5xf32, #tpu.memory_space<smem>>
      %71 = vector.broadcast %70 : f32 to vector<16x128xf32>
      %72 = arith.select %60, %71, %57 : vector<16x128xi1>, vector<16x128xf32>
      %c4 = arith.constant 4 : index
      %73 = memref.load %arg3[%c4] : memref<5xi32, #tpu.memory_space<smem>>
      %74 = vector.broadcast %73 : i32 to vector<16x128xi32>
      %75 = arith.cmpi sge, %19, %74 : vector<16x128xi32>
      %c4_20 = arith.constant 4 : index
      %76 = memref.load %arg4[%c4_20] : memref<5xf32, #tpu.memory_space<smem>>
      %77 = vector.broadcast %76 : f32 to vector<16x128xf32>
      %78 = arith.select %75, %77, %63 : vector<16x128xi1>, vector<16x128xf32>
      %c4_21 = arith.constant 4 : index
      %79 = memref.load %arg5[%c4_21] : memref<5xf32, #tpu.memory_space<smem>>
      %80 = vector.broadcast %79 : f32 to vector<16x128xf32>
      %81 = arith.select %75, %80, %66 : vector<16x128xi1>, vector<16x128xf32>
      %c4_22 = arith.constant 4 : index
      %82 = memref.load %arg6[%c4_22] : memref<5xf32, #tpu.memory_space<smem>>
      %83 = vector.broadcast %82 : f32 to vector<16x128xf32>
      %84 = arith.select %75, %83, %69 : vector<16x128xi1>, vector<16x128xf32>
      %c4_23 = arith.constant 4 : index
      %85 = memref.load %arg7[%c4_23] : memref<5xf32, #tpu.memory_space<smem>>
      %86 = vector.broadcast %85 : f32 to vector<16x128xf32>
      %87 = arith.select %75, %86, %72 : vector<16x128xi1>, vector<16x128xf32>
      %88 = arith.addf %4, %81 : vector<16x128xf32>
      %89 = arith.mulf %87, %4 : vector<16x128xf32>
      %90 = arith.addf %89, %84 : vector<16x128xf32>
      %91 = arith.mulf %88, %5 : vector<16x128xf32>
      %92 = arith.addf %90, %91 : vector<16x128xf32>
      %93 = tpu.reciprocal %92 {approx = true} : vector<16x128xf32> -> vector<16x128xf32>
      %94 = arith.mulf %92, %93 : vector<16x128xf32>
      %cst = arith.constant 2.000000e+00 : f32
      %95 = vector.broadcast %cst : f32 to vector<16x128xf32>
      %96 = arith.subf %95, %94 : vector<16x128xf32>
      %97 = arith.mulf %93, %96 : vector<16x128xf32>
      %98 = arith.mulf %78, %88 : vector<16x128xf32>
      %99 = arith.mulf %98, %97 : vector<16x128xf32>
      %c0_24 = arith.constant 0 : index
      %c0_25 = arith.constant 0 : index
      %100 = vector.load %arg10[%c0_24, %c0_25] : memref<16x128xf32, #tpu.memory_space<vmem>>, vector<16x128xf32>
      tpu.vector_store %arg10[%c0_24, %c0_25], %99 {strides = array<i32>} : memref<16x128xf32, #tpu.memory_space<vmem>>, vector<16x128xf32>,
    } else {
    }
    return
  }
  func.func @transform_0(%arg0: i32) -> i32 {
    %c0_i32 = arith.constant 0 : i32
    %c0_i32_0 = arith.constant 0 : i32
    return %c0_i32 : i32
  }
  func.func @transform_1(%arg0: i32) -> i32 {
    %c0_i32 = arith.constant 0 : i32
    %c0_i32_0 = arith.constant 0 : i32
    return %c0_i32 : i32
  }
  func.func @transform_2(%arg0: i32) -> i32 {
    %c0_i32 = arith.constant 0 : i32
    %c0_i32_0 = arith.constant 0 : i32
    return %c0_i32 : i32
  }
  func.func @transform_3(%arg0: i32) -> i32 {
    %c0_i32 = arith.constant 0 : i32
    %c0_i32_0 = arith.constant 0 : i32
    return %c0_i32 : i32
  }
  func.func @transform_4(%arg0: i32) -> i32 {
    %c0_i32 = arith.constant 0 : i32
    %c0_i32_0 = arith.constant 0 : i32
    return %c0_i32 : i32
  }
  func.func @transform_5(%arg0: i32) -> i32 {
    %c0_i32 = arith.constant 0 : i32
    %c0_i32_0 = arith.constant 0 : i32
    return %c0_i32 : i32
  }
  func.func @transform_6(%arg0: i32) -> i32 {
    %c0_i32 = arith.constant 0 : i32
    %c0_i32_0 = arith.constant 0 : i32
    return %c0_i32 : i32
  }
  func.func @transform_7(%arg0: i32) -> (i32, i32) {
    %c0_i32 = arith.constant 0 : i32
    %c0_i32_0 = arith.constant 0 : i32
    return %arg0, %c0_i32 : i32, i32
  }
  func.func @transform_8(%arg0: i32) -> (i32, i32) {
    %c0_i32 = arith.constant 0 : i32
    %c0_i32_0 = arith.constant 0 : i32
    return %arg0, %c0_i32 : i32, i32
  }
  func.func @transform_9(%arg0: i32) -> (i32, i32) {
    %c0_i32 = arith.constant 0 : i32
    %c0_i32_0 = arith.constant 0 : i32
    return %arg0, %c0_i32 : i32, i32
  }
}

</mosaic_0001>

<llo_original>
// kernel: tpu_custom_call.1
$region0: #{tpu_custom_call.1}
  #allocation0 [shape = 'u32[]', space=smem, size = 0x4, offset = 0x4, fixed_abs, tag = 'smem constant byte address 0x4 - core index']
  #allocation1 [shape = 'u32[144,128]{1,0:T(1,128)}', space=vmem, size = 0x12000, scoped, tag = 'internal scratch']
  %s0 = inlined_call_operand.hbm [shape: s32[2], index: 0, kind: input, shape index: {}]
  %s1 = inlined_call_operand.vmem [shape: s32[2], index: 1, kind: input, shape index: {}]
  %s2 = inlined_call_operand.vmem [shape: s32[5], index: 2, kind: input, shape index: {}]
  %s3 = inlined_call_operand.vmem [shape: f32[5], index: 3, kind: input, shape index: {}]
  %s4 = inlined_call_operand.vmem [shape: f32[5], index: 4, kind: input, shape index: {}]
  %s5 = inlined_call_operand.vmem [shape: f32[5], index: 5, kind: input, shape index: {}]
  %s6 = inlined_call_operand.vmem [shape: f32[5], index: 6, kind: input, shape index: {}]
  %s7 = inlined_call_operand.hbm [shape: f32[24,128], index: 7, kind: input, shape index: {}]
  %s8 = inlined_call_operand.hbm [shape: f32[24,128], index: 8, kind: input, shape index: {}]
  %s9 = inlined_call_operand.hbm [shape: f32[24,128], index: 9, kind: output, shape index: {}]
  %s10 = sld [smem:[#allocation0]]
  $region113: #{tpu_custom_call.1} parent=0
    _
  %s12 = ssub.s32 1, %s10
  %s13 = scalar_select 0, %s12, %s10
  $region1: #{tpu_custom_call.1} parent=0
    #allocation2 [shape = 'u8[512]{0}', space=smem, size = 0x200, scoped, tag = 'input window, operand 0, single buffered']
    #allocation3 [shape = 's32[2]{0}', space=sflag, size = 0x8, scoped, tag = 'scoped memory for tpu_custom_call.1']
    #allocation4 [shape = 's32[2]{0}', space=sflag, size = 0x8, scoped, tag = 'scoped memory for tpu_custom_call.1']
    #allocation5 [shape = 's32[2]{0}', space=sflag, size = 0x8, scoped, tag = 'scoped memory for tpu_custom_call.1']
    #allocation6 [shape = 's32[2]{0}', space=sflag, size = 0x8, scoped, tag = 'scoped memory for tpu_custom_call.1']
    #allocation7 [shape = 'u8[512]{0}', space=smem, size = 0x200, scoped, tag = 'input window, operand 1, single buffered']
    #allocation8 [shape = 'u8[512]{0}', space=smem, size = 0x200, scoped, tag = 'input window, operand 2, single buffered']
    #allocation9 [shape = 's32[1]{0}', space=sflag, size = 0x4, scoped, tag = 'scoped memory for tpu_custom_call.1']
    #allocation10 [shape = 'u8[512]{0}', space=smem, size = 0x200, scoped, tag = 'input window, operand 3, single buffered']
    #allocation11 [shape = 'u8[512]{0}', space=smem, size = 0x200, scoped, tag = 'input window, operand 4, single buffered']
    #allocation12 [shape = 's32[1]{0}', space=sflag, size = 0x4, scoped, tag = 'scoped memory for tpu_custom_call.1']
    #allocation13 [shape = 'u8[512]{0}', space=smem, size = 0x200, scoped, tag = 'input window, operand 5, single buffered']
    #allocation14 [shape = 'u8[512]{0}', space=smem, size = 0x200, scoped, tag = 'input window, operand 6, single buffered']
    #allocation15 [shape = 's32[1]{0}', space=sflag, size = 0x4, scoped, tag = 'scoped memory for tpu_custom_call.1']
    #allocation16 [shape = 'u8[16384]{0}', space=vmem, size = 0x4000, scoped, tag = 'input window, operand 7']
    #allocation17 [shape = 'u8[16384]{0}', space=vmem, size = 0x4000, scoped, tag = 'input window, operand 8']
    #allocation18 [shape = 's32[2]{0}', space=sflag, size = 0x8, scoped, tag = 'scoped memory for tpu_custom_call.1']
    #allocation19 [shape = 'u8[16384]{0}', space=vmem, size = 0x4000, scoped, tag = 'output window, operand 0']
    %14 = vsyncpa [#allocation5], 0
    %15 = vsyncpa [#allocation6], 0
    %16 = vsyncpa [#allocation9], 0
    %17 = vsyncpa [#allocation12], 0
    %18 = vsyncpa [#allocation15], 0
    %19 = vsyncpa [#allocation3], 0
    %s20 = scalar_lea.sflag [#allocation3], 1
    %21 = vsyncpa %s20, 0
    %22 = vsyncpa [#allocation18], 0
    %s23 = scalar_lea.sflag [#allocation18], 1
    %24 = vsyncpa %s23, 0
    %25 = vsyncpa [#allocation4], 0
    %s26 = scalar_lea.sflag [#allocation4], 1
    %27 = vsyncpa %s26, 0
    loop: start=0, step=1, limit=4
    $region2: #{tpu_custom_call.1} parent=1 // loop_pre_header
      _
    $region3: #{tpu_custom_call.1} parent=1 // loop_header
      %s29 = sphi 0, %s33
      %p30 = scmp.ge.s32.totalorder %s29, 4
      %s37 = sphi 0, %s37
      %s39 = sphi 0, %s37
      %s40 = sphi 0, %s39
      %s54 = sphi 0, %s40
      %s58 = sphi 0, %s58
      %s60 = sphi 0, %s58
      %s61 = sphi 0, %s60
      %s75 = sphi 0, %s61
      %s79 = sphi 0, %s79
      %s81 = sphi 0, %s79
      %s82 = sphi 0, %s81
      %s96 = sphi 0, %s82
      %s100 = sphi 0, %s100
      %s102 = sphi 0, %s100
      %s103 = sphi 0, %s102
      %s117 = sphi 0, %s103
      %s121 = sphi 0, %s121
      %s123 = sphi 0, %s121
      %s124 = sphi 0, %s123
      %s138 = sphi 0, %s124
      %s142 = sphi 0, %s142
      %s144 = sphi 0, %s142
      %s145 = sphi 0, %s144
      %s159 = sphi 0, %s145
      %s163 = sphi 0, %s163
      %s165 = sphi 0, %s163
      %s166 = sphi 0, %s165
      %s180 = sphi 0, %s166
      %s186 = sphi 0, %s188
      %s189 = sphi 0, %s186
      %s190 = sphi 0, %s189
      %s206 = sphi 0, %s190
      %s212 = sphi 0, %s214
      %s215 = sphi 0, %s212
      %s216 = sphi 0, %s215
      %s232 = sphi 0, %s216
      %s238 = sphi 0, %s240
      %s241 = sphi 0, %s238
      %s242 = sphi 0, %s241
      %s258 = sphi 0, %s242
    $region4: #{tpu_custom_call.1} parent=1 // loop_header_branch
      %32 = sbr.rel (%p30) target = $region8
    $region5: #{tpu_custom_call.1} parent=1 // loop_body
      %s34 = ssub.s32 %s29, 1
      %s35 = ssub.s32 %s29, 2
      %s36 = sadd.s32 %s29, 1
      %s38 = sadd.s32 %s37, 1
      %p41 = scmp.eq.s32.totalorder %s29, 1
      %p42 = scmp.ne.s32.totalorder %s37, %s39
      %p43 = scmp.eq.s32.totalorder %s29, 0
      %p44 = por %p42, %p43
      %p45 = scmp.ne.s32.totalorder %s37, %s39
      %p46 = scmp.eq.s32.totalorder %s34, 1
      %p47 = por %p45, %p46
      %p48 = scmp.ne.s32.totalorder %s39, %s40
      %p49 = scmp.eq.s32.totalorder %s34, 0
      %p50 = por %p48, %p49
      %p51 = scmp.ne.s32.totalorder %s39, %s40
      %p52 = scmp.eq.s32.totalorder %s35, 1
      %p53 = por %p51, %p52
      %p55 = scmp.ne.s32.totalorder %s40, %s54
      %p56 = scmp.eq.s32.totalorder %s35, 0
      %p57 = por %p55, %p56
      %s59 = sadd.s32 %s58, 1
      %p62 = scmp.eq.s32.totalorder %s29, 1
      %p63 = scmp.ne.s32.totalorder %s58, %s60
      %p64 = scmp.eq.s32.totalorder %s29, 0
      %p65 = por %p63, %p64
      %p66 = scmp.ne.s32.totalorder %s58, %s60
      %p67 = scmp.eq.s32.totalorder %s34, 1
      %p68 = por %p66, %p67
      %p69 = scmp.ne.s32.totalorder %s60, %s61
      %p70 = scmp.eq.s32.totalorder %s34, 0
      %p71 = por %p69, %p70
      %p72 = scmp.ne.s32.totalorder %s60, %s61
      %p73 = scmp.eq.s32.totalorder %s35, 1
      %p74 = por %p72, %p73
      %p76 = scmp.ne.s32.totalorder %s61, %s75
      %p77 = scmp.eq.s32.totalorder %s35, 0
      %p78 = por %p76, %p77
      %s80 = sadd.s32 %s79, 1
      %p83 = scmp.eq.s32.totalorder %s29, 1
      %p84 = scmp.ne.s32.totalorder %s79, %s81
      %p85 = scmp.eq.s32.totalorder %s29, 0
      %p86 = por %p84, %p85
      %p87 = scmp.ne.s32.totalorder %s79, %s81
      %p88 = scmp.eq.s32.totalorder %s34, 1
      %p89 = por %p87, %p88
      %p90 = scmp.ne.s32.totalorder %s81, %s82
      %p91 = scmp.eq.s32.totalorder %s34, 0
      %p92 = por %p90, %p91
      %p93 = scmp.ne.s32.totalorder %s81, %s82
      %p94 = scmp.eq.s32.totalorder %s35, 1
      %p95 = por %p93, %p94
      %p97 = scmp.ne.s32.totalorder %s82, %s96
      %p98 = scmp.eq.s32.totalorder %s35, 0
      %p99 = por %p97, %p98
      %s101 = sadd.s32 %s100, 1
      %p104 = scmp.eq.s32.totalorder %s29, 1
      %p105 = scmp.ne.s32.totalorder %s100, %s102
      %p106 = scmp.eq.s32.totalorder %s29, 0
      %p107 = por %p105, %p106
      %p108 = scmp.ne.s32.totalorder %s100, %s102
      %p109 = scmp.eq.s32.totalorder %s34, 1
      %p110 = por %p108, %p109
      %p111 = scmp.ne.s32.totalorder %s102, %s103
      %p112 = scmp.eq.s32.totalorder %s34, 0
      %p113 = por %p111, %p112
      %p114 = scmp.ne.s32.totalorder %s102, %s103
      %p115 = scmp.eq.s32.totalorder %s35, 1
      %p116 = por %p114, %p115
      %p118 = scmp.ne.s32.totalorder %s103, %s117
      %p119 = scmp.eq.s32.totalorder %s35, 0
      %p120 = por %p118, %p119
      %s122 = sadd.s32 %s121, 1
      %p125 = scmp.eq.s32.totalorder %s29, 1
      %p126 = scmp.ne.s32.totalorder %s121, %s123
      %p127 = scmp.eq.s32.totalorder %s29, 0
      %p128 = por %p126, %p127
      %p129 = scmp.ne.s32.totalorder %s121, %s123
      %p130 = scmp.eq.s32.totalorder %s34, 1
      %p131 = por %p129, %p130
      %p132 = scmp.ne.s32.totalorder %s123, %s124
      %p133 = scmp.eq.s32.totalorder %s34, 0
      %p134 = por %p132, %p133
      %p135 = scmp.ne.s32.totalorder %s123, %s124
      %p136 = scmp.eq.s32.totalorder %s35, 1
      %p137 = por %p135, %p136
      %p139 = scmp.ne.s32.totalorder %s124, %s138
      %p140 = scmp.eq.s32.totalorder %s35, 0
      %p141 = por %p139, %p140
      %s143 = sadd.s32 %s142, 1
      %p146 = scmp.eq.s32.totalorder %s29, 1
      %p147 = scmp.ne.s32.totalorder %s142, %s144
      %p148 = scmp.eq.s32.totalorder %s29, 0
      %p149 = por %p147, %p148
      %p150 = scmp.ne.s32.totalorder %s142, %s144
      %p151 = scmp.eq.s32.totalorder %s34, 1
      %p152 = por %p150, %p151
      %p153 = scmp.ne.s32.totalorder %s144, %s145
      %p154 = scmp.eq.s32.totalorder %s34, 0
      %p155 = por %p153, %p154
      %p156 = scmp.ne.s32.totalorder %s144, %s145
      %p157 = scmp.eq.s32.totalorder %s35, 1
      %p158 = por %p156, %p157
      %p160 = scmp.ne.s32.totalorder %s145, %s159
      %p161 = scmp.eq.s32.totalorder %s35, 0
      %p162 = por %p160, %p161
      %s164 = sadd.s32 %s163, 1
      %p167 = scmp.eq.s32.totalorder %s29, 1
      %p168 = scmp.ne.s32.totalorder %s163, %s165
      %p169 = scmp.eq.s32.totalorder %s29, 0
      %p170 = por %p168, %p169
      %p171 = scmp.ne.s32.totalorder %s163, %s165
      %p172 = scmp.eq.s32.totalorder %s34, 1
      %p173 = por %p171, %p172
      %p174 = scmp.ne.s32.totalorder %s165, %s166
      %p175 = scmp.eq.s32.totalorder %s34, 0
      %p176 = por %p174, %p175
      %p177 = scmp.ne.s32.totalorder %s165, %s166
      %p178 = scmp.eq.s32.totalorder %s35, 1
      %p179 = por %p177, %p178
      %p181 = scmp.ne.s32.totalorder %s166, %s180
      %p182 = scmp.eq.s32.totalorder %s35, 0
      %p183 = por %p181, %p182
      %s184 = ssub.s32 %s29, %s36
      %p185 = scmp.eq.s32.totalorder %s184, 0
      %s187 = sadd.s32 %s186, 1
      %s188 = scalar_select %p185, %s186, %s187
      %p191 = pneg %p185
      %p192 = scmp.eq.s32.totalorder %s29, 1
      %p193 = por %p191, %p192
      %p194 = scmp.ne.s32.totalorder %s186, %s189
      %p195 = scmp.eq.s32.totalorder %s29, 0
      %p196 = por %p194, %p195
      %p197 = scmp.ne.s32.totalorder %s186, %s189
      %p198 = scmp.eq.s32.totalorder %s34, 1
      %p199 = por %p197, %p198
      %p200 = scmp.ne.s32.totalorder %s189, %s190
      %p201 = scmp.eq.s32.totalorder %s34, 0
      %p202 = por %p200, %p201
      %p203 = scmp.ne.s32.totalorder %s189, %s190
      %p204 = scmp.eq.s32.totalorder %s35, 1
      %p205 = por %p203, %p204
      %p207 = scmp.ne.s32.totalorder %s190, %s206
      %p208 = scmp.eq.s32.totalorder %s35, 0
      %p209 = por %p207, %p208
      %s210 = ssub.s32 %s29, %s36
      %p211 = scmp.eq.s32.totalorder %s210, 0
      %s213 = sadd.s32 %s212, 1
      %s214 = scalar_select %p211, %s212, %s213
      %p217 = pneg %p211
      %p218 = scmp.eq.s32.totalorder %s29, 1
      %p219 = por %p217, %p218
      %p220 = scmp.ne.s32.totalorder %s212, %s215
      %p221 = scmp.eq.s32.totalorder %s29, 0
      %p222 = por %p220, %p221
      %p223 = scmp.ne.s32.totalorder %s212, %s215
      %p224 = scmp.eq.s32.totalorder %s34, 1
      %p225 = por %p223, %p224
      %p226 = scmp.ne.s32.totalorder %s215, %s216
      %p227 = scmp.eq.s32.totalorder %s34, 0
      %p228 = por %p226, %p227
      %p229 = scmp.ne.s32.totalorder %s215, %s216
      %p230 = scmp.eq.s32.totalorder %s35, 1
      %p231 = por %p229, %p230
      %p233 = scmp.ne.s32.totalorder %s216, %s232
      %p234 = scmp.eq.s32.totalorder %s35, 0
      %p235 = por %p233, %p234
      %s236 = ssub.s32 %s29, %s36
      %p237 = scmp.eq.s32.totalorder %s236, 0
      %s239 = sadd.s32 %s238, 1
      %s240 = scalar_select %p237, %s238, %s239
      %p243 = pneg %p237
      %p244 = scmp.eq.s32.totalorder %s29, 1
      %p245 = por %p243, %p244
      %p246 = scmp.ne.s32.totalorder %s238, %s241
      %p247 = scmp.eq.s32.totalorder %s29, 0
      %p248 = por %p246, %p247
      %p249 = scmp.ne.s32.totalorder %s238, %s241
      %p250 = scmp.eq.s32.totalorder %s34, 1
      %p251 = por %p249, %p250
      %p252 = scmp.ne.s32.totalorder %s241, %s242
      %p253 = scmp.eq.s32.totalorder %s34, 0
      %p254 = por %p252, %p253
      %p255 = scmp.ne.s32.totalorder %s241, %s242
      %p256 = scmp.eq.s32.totalorder %s35, 1
      %p257 = por %p255, %p256
      %p259 = scmp.ne.s32.totalorder %s242, %s258
      %p260 = scmp.eq.s32.totalorder %s35, 0
      %p261 = por %p259, %p260
      %p262 = scmp.le.s32.totalorder 1, %s29
      %p263 = scmp.lt.s32.totalorder %s29, 3
      %p264 = pnand %p262, %p263
      %p265 = pneg %p264
      // Predicated region
      $region9: #{tpu_custom_call.1} parent=5 // pred_check
        _
      $region10: #{tpu_custom_call.1} parent=5 // pred_check_branch
        %267 = sbr.rel (%p264) target = $region12
      $region11: #{tpu_custom_call.1} parent=5 // pred_region
        %s268 = ssub.s32 %s29, 1
        // Predicated region
        $region13: #{tpu_custom_call.1} parent=11 // pred_check
          %p269 = pneg %p50
        $region14: #{tpu_custom_call.1} parent=11 // pred_check_branch
          %271 = sbr.rel (%p269) target = $region16
        $region15: #{tpu_custom_call.1} parent=11 // pred_region
          %s273 = ssub.s32 16, 16
          %274 = vsyncadd [#allocation5], %s273
          %277 = dma.hbm_to_smem %s0, 16, [#allocation2], [#allocation5]
        $region16: #{tpu_custom_call.1} parent=11 // pred_fallthru
          _
        // Predicated region
        $region17: #{tpu_custom_call.1} parent=11 // pred_check
          %p278 = pneg %p71
        $region18: #{tpu_custom_call.1} parent=11 // pred_check_branch
          %280 = sbr.rel (%p278) target = $region20
        $region19: #{tpu_custom_call.1} parent=11 // pred_region
          %s282 = ssub.s32 16, 16
          %283 = vsyncadd [#allocation6], %s282
          %s285 = sshll.u32 %s1, 4
          %s286 = int_to_ptr.vmem [resolvable:$true] %s285
          %288 = dma.vmem_to_smem %s286, 16, [#allocation7], [#allocation6]
        $region20: #{tpu_custom_call.1} parent=11 // pred_fallthru
          _
        // Predicated region
        $region21: #{tpu_custom_call.1} parent=11 // pred_check
          %p289 = pneg %p92
        $region22: #{tpu_custom_call.1} parent=11 // pred_check_branch
          %291 = sbr.rel (%p289) target = $region24
        $region23: #{tpu_custom_call.1} parent=11 // pred_region
          %s293 = ssub.s32 16, 16
          %294 = vsyncadd [#allocation9], %s293
          %s296 = sshll.u32 %s2, 4
          %s297 = int_to_ptr.vmem [resolvable:$true] %s296
          %299 = dma.vmem_to_smem %s297, 16, [#allocation8], [#allocation9]
        $region24: #{tpu_custom_call.1} parent=11 // pred_fallthru
          _
        // Predicated region
        $region25: #{tpu_custom_call.1} parent=11 // pred_check
          %p300 = pneg %p113
        $region26: #{tpu_custom_call.1} parent=11 // pred_check_branch
          %302 = sbr.rel (%p300) target = $region28
        $region27: #{tpu_custom_call.1} parent=11 // pred_region
          %s304 = ssub.s32 16, 16
          %305 = vsyncadd [#allocation9], %s304
          %s307 = sshll.u32 %s3, 4
          %s308 = int_to_ptr.vmem [resolvable:$true] %s307
          %310 = dma.vmem_to_smem %s308, 16, [#allocation10], [#allocation9]
        $region28: #{tpu_custom_call.1} parent=11 // pred_fallthru
          _
        // Predicated region
        $region29: #{tpu_custom_call.1} parent=11 // pred_check
          %p311 = pneg %p134
        $region30: #{tpu_custom_call.1} parent=11 // pred_check_branch
          %313 = sbr.rel (%p311) target = $region32
        $region31: #{tpu_custom_call.1} parent=11 // pred_region
          %s315 = ssub.s32 16, 16
          %316 = vsyncadd [#allocation12], %s315
          %s318 = sshll.u32 %s4, 4
          %s319 = int_to_ptr.vmem [resolvable:$true] %s318
          %321 = dma.vmem_to_smem %s319, 16, [#allocation11], [#allocation12]
        $region32: #{tpu_custom_call.1} parent=11 // pred_fallthru
          _
        // Predicated region
        $region33: #{tpu_custom_call.1} parent=11 // pred_check
          %p322 = pneg %p155
        $region34: #{tpu_custom_call.1} parent=11 // pred_check_branch
          %324 = sbr.rel (%p322) target = $region36
        $region35: #{tpu_custom_call.1} parent=11 // pred_region
          %s326 = ssub.s32 16, 16
          %327 = vsyncadd [#allocation12], %s326
          %s329 = sshll.u32 %s5, 4
          %s330 = int_to_ptr.vmem [resolvable:$true] %s329
          %332 = dma.vmem_to_smem %s330, 16, [#allocation13], [#allocation12]
        $region36: #{tpu_custom_call.1} parent=11 // pred_fallthru
          _
        // Predicated region
        $region37: #{tpu_custom_call.1} parent=11 // pred_check
          %p333 = pneg %p176
        $region38: #{tpu_custom_call.1} parent=11 // pred_check_branch
          %335 = sbr.rel (%p333) target = $region40
        $region39: #{tpu_custom_call.1} parent=11 // pred_region
          %s337 = ssub.s32 16, 16
          %338 = vsyncadd [#allocation15], %s337
          %s340 = sshll.u32 %s6, 4
          %s341 = int_to_ptr.vmem [resolvable:$true] %s340
          %343 = dma.vmem_to_smem %s341, 16, [#allocation14], [#allocation15]
        $region40: #{tpu_custom_call.1} parent=11 // pred_fallthru
          _
      $region12: #{tpu_custom_call.1} parent=5 // pred_fallthru
        _
      %p344 = scmp.lt.s32.totalorder %s29, 2
      // Predicated region
      $region41: #{tpu_custom_call.1} parent=5 // pred_check
        %p345 = pneg %p344
      $region42: #{tpu_custom_call.1} parent=5 // pred_check_branch
        %347 = sbr.rel (%p345) target = $region44
      $region43: #{tpu_custom_call.1} parent=5 // pred_region
        // Predicated region
        $region45: #{tpu_custom_call.1} parent=43 // pred_check
          %p348 = pneg %p196
        $region46: #{tpu_custom_call.1} parent=43 // pred_check_branch
          %350 = sbr.rel (%p348) target = $region48
        $region47: #{tpu_custom_call.1} parent=43 // pred_region
          %s351 = sand.u32 %s186, 1
          %s352 = scalar_lea.sflag [#allocation3], %s351
          %s353 = sand.u32 %s186, 1
          %s354 = smul.addr %s353, 16
          %s355 = scalar_lea.vmem [#allocation16], %s354
          %s356 = smul.u32 2, %s29
          %s357 = ssub.s32 3, %s356
          %p358 = scmp.lt.s32.totalorder %s357, 2
          %s359 = scalar_select %p358, %s357, 2
          %s360 = smul.u32 128, %s359
          %s362 = ssub.s32 256, %s360
          %363 = vsyncadd %s352, %s362
          %p364 = scmp.ne.s32.totalorder 0, %s360
          %s365 = smul.addr %s356, 128
          %s366 = scalar_lea.hbm %s7, %s365
          %s367 = smul.u32 8, %s359
          %s368 = sshll.u32 %s355, 4
          %s369 = int_to_ptr.vmem [resolvable:$true] %s368
          %s370 = sshll.u32 %s367, 4
          %374 = dma.hbm_to_vmem [thread:$0]  (%p364), %s366, %s370, %s369, %s352, 128, 128, 8
        $region48: #{tpu_custom_call.1} parent=43 // pred_fallthru
          _
        // Predicated region
        $region49: #{tpu_custom_call.1} parent=43 // pred_check
          %p375 = pneg %p222
        $region50: #{tpu_custom_call.1} parent=43 // pred_check_branch
          %377 = sbr.rel (%p375) target = $region52
        $region51: #{tpu_custom_call.1} parent=43 // pred_region
          %s378 = sand.u32 %s212, 1
          %s379 = scalar_lea.sflag [#allocation18], %s378
          %s380 = sand.u32 %s212, 1
          %s381 = smul.addr %s380, 16
          %s382 = scalar_lea.vmem [#allocation17], %s381
          %s383 = smul.u32 2, %s29
          %s384 = ssub.s32 3, %s383
          %p385 = scmp.lt.s32.totalorder %s384, 2
          %s386 = scalar_select %p385, %s384, 2
          %s387 = smul.u32 128, %s386
          %s389 = ssub.s32 256, %s387
          %390 = vsyncadd %s379, %s389
          %p391 = scmp.ne.s32.totalorder 0, %s387
          %s392 = smul.addr %s383, 128
          %s393 = scalar_lea.hbm %s8, %s392
          %s394 = smul.u32 8, %s386
          %s395 = sshll.u32 %s382, 4
          %s396 = int_to_ptr.vmem [resolvable:$true] %s395
          %s397 = sshll.u32 %s394, 4
          %401 = dma.hbm_to_vmem [thread:$0]  (%p391), %s393, %s397, %s396, %s379, 128, 128, 8
        $region52: #{tpu_custom_call.1} parent=43 // pred_fallthru
          _
      $region44: #{tpu_custom_call.1} parent=5 // pred_fallthru
        _
      %p402 = scmp.le.s32.totalorder 1, %s29
      %p403 = scmp.lt.s32.totalorder %s29, 3
      %p404 = pnand %p402, %p403
      %p405 = pneg %p404
      // Predicated region
      $region53: #{tpu_custom_call.1} parent=5 // pred_check
        _
      $region54: #{tpu_custom_call.1} parent=5 // pred_check_branch
        %407 = sbr.rel (%p404) target = $region56
      $region55: #{tpu_custom_call.1} parent=5 // pred_region
        %s408 = ssub.s32 %s29, 1
        // Predicated region
        $region57: #{tpu_custom_call.1} parent=55 // pred_check
          %p409 = pneg %p50
        $region58: #{tpu_custom_call.1} parent=55 // pred_check_branch
          %411 = sbr.rel (%p409) target = $region60
        $region59: #{tpu_custom_call.1} parent=55 // pred_region
          %412 = dma.done [#allocation5], 16
        $region60: #{tpu_custom_call.1} parent=55 // pred_fallthru
          _
        // Predicated region
        $region61: #{tpu_custom_call.1} parent=55 // pred_check
          %p413 = pneg %p71
        $region62: #{tpu_custom_call.1} parent=55 // pred_check_branch
          %415 = sbr.rel (%p413) target = $region64
        $region63: #{tpu_custom_call.1} parent=55 // pred_region
          %416 = dma.done [#allocation6], 16
        $region64: #{tpu_custom_call.1} parent=55 // pred_fallthru
          _
        // Predicated region
        $region65: #{tpu_custom_call.1} parent=55 // pred_check
          %p417 = pneg %p92
        $region66: #{tpu_custom_call.1} parent=55 // pred_check_branch
          %419 = sbr.rel (%p417) target = $region68
        $region67: #{tpu_custom_call.1} parent=55 // pred_region
          %420 = dma.done [#allocation9], 16
        $region68: #{tpu_custom_call.1} parent=55 // pred_fallthru
          _
        // Predicated region
        $region69: #{tpu_custom_call.1} parent=55 // pred_check
          %p421 = pneg %p113
        $region70: #{tpu_custom_call.1} parent=55 // pred_check_branch
          %423 = sbr.rel (%p421) target = $region72
        $region71: #{tpu_custom_call.1} parent=55 // pred_region
          %424 = dma.done [#allocation9], 16
        $region72: #{tpu_custom_call.1} parent=55 // pred_fallthru
          _
        // Predicated region
        $region73: #{tpu_custom_call.1} parent=55 // pred_check
          %p425 = pneg %p134
        $region74: #{tpu_custom_call.1} parent=55 // pred_check_branch
          %427 = sbr.rel (%p425) target = $region76
        $region75: #{tpu_custom_call.1} parent=55 // pred_region
          %428 = dma.done [#allocation12], 16
        $region76: #{tpu_custom_call.1} parent=55 // pred_fallthru
          _
        // Predicated region
        $region77: #{tpu_custom_call.1} parent=55 // pred_check
          %p429 = pneg %p155
        $region78: #{tpu_custom_call.1} parent=55 // pred_check_branch
          %431 = sbr.rel (%p429) target = $region80
        $region79: #{tpu_custom_call.1} parent=55 // pred_region
          %432 = dma.done [#allocation12], 16
        $region80: #{tpu_custom_call.1} parent=55 // pred_fallthru
          _
        // Predicated region
        $region81: #{tpu_custom_call.1} parent=55 // pred_check
          %p433 = pneg %p176
        $region82: #{tpu_custom_call.1} parent=55 // pred_check_branch
          %435 = sbr.rel (%p433) target = $region84
        $region83: #{tpu_custom_call.1} parent=55 // pred_region
          %436 = dma.done [#allocation15], 16
        $region84: #{tpu_custom_call.1} parent=55 // pred_fallthru
          _
        %s437 = sand.u32 %s189, 1
        %s438 = scalar_lea.sflag [#allocation3], %s437
        %s439 = sand.u32 %s189, 1
        %s440 = smul.addr %s439, 16
        %s441 = scalar_lea.vmem [#allocation16], %s440
        // Predicated region
        $region85: #{tpu_custom_call.1} parent=55 // pred_check
          %p442 = pneg %p202
        $region86: #{tpu_custom_call.1} parent=55 // pred_check_branch
          %444 = sbr.rel (%p442) target = $region88
        $region87: #{tpu_custom_call.1} parent=55 // pred_region
          %445 = dma.done %s438, 256
        $region88: #{tpu_custom_call.1} parent=55 // pred_fallthru
          _
        %s446 = sand.u32 %s215, 1
        %s447 = scalar_lea.sflag [#allocation18], %s446
        %s448 = sand.u32 %s215, 1
        %s449 = smul.addr %s448, 16
        %s450 = scalar_lea.vmem [#allocation17], %s449
        // Predicated region
        $region89: #{tpu_custom_call.1} parent=55 // pred_check
          %p451 = pneg %p228
        $region90: #{tpu_custom_call.1} parent=55 // pred_check_branch
          %453 = sbr.rel (%p451) target = $region92
        $region91: #{tpu_custom_call.1} parent=55 // pred_region
          %454 = dma.done %s447, 256
        $region92: #{tpu_custom_call.1} parent=55 // pred_fallthru
          _
        %455 = sfence
        %p456 = pneg %p50
        %p457 = pneg %p47
        %p458 = pneg %p71
        %p459 = pneg %p68
        %p460 = pneg %p92
        %p461 = pneg %p89
        %p462 = pneg %p113
        %p463 = pneg %p110
        %p464 = pneg %p134
        %p465 = pneg %p131
        %p466 = pneg %p155
        %p467 = pneg %p152
        %p468 = pneg %p176
        %p469 = pneg %p173
        %s470 = sand.u32 %s189, 1
        %s471 = scalar_lea.sflag [#allocation3], %s470
        %s472 = sand.u32 %s189, 1
        %s473 = smul.addr %s472, 16
        %s474 = scalar_lea.vmem [#allocation16], %s473
        %p475 = pneg %p202
        %p476 = pneg %p199
        %s477 = sand.u32 %s215, 1
        %s478 = scalar_lea.sflag [#allocation18], %s477
        %s479 = sand.u32 %s215, 1
        %s480 = smul.addr %s479, 16
        %s481 = scalar_lea.vmem [#allocation17], %s480
        %p482 = pneg %p228
        %p483 = pneg %p225
        %p484 = pneg %p254
        %p485 = pneg %p251
        %s486 = sand.u32 %s241, 1
        %s487 = scalar_lea.sflag [#allocation4], %s486
        %s488 = sand.u32 %s241, 1
        %s489 = smul.addr %s488, 16
        %s490 = scalar_lea.vmem [#allocation19], %s489
        %s491 = smul.u32 2, %s34
        %s492 = ssub.s32 3, %s491
        %p493 = scmp.lt.s32.totalorder %s492, 2
        %s494 = scalar_select %p493, %s492, 2
        %s495 = smul.u32 128, %s494
        %s496 = smul.u32 2, %s34
        %s497 = ssub.s32 3, %s496
        %p498 = scmp.lt.s32.totalorder %s497, 2
        %s499 = scalar_select %p498, %s497, 2
        %s500 = smul.u32 128, %s499
        %s501 = smul.u32 2, %s34
        %s502 = ssub.s32 3, %s501
        %p503 = scmp.lt.s32.totalorder %s502, 2
        %s504 = scalar_select %p503, %s502, 2
        %s505 = smul.u32 128, %s504
        %s506 = sld [smem:[#allocation2 + %s34]]
        %s507 = sld [smem:[#allocation7 + %s34]]
        %v508 = vld [vmem:[%s441] sm:$0xff]
        %v509 = vld [vmem:[%s441 + $0x8] sm:$0xff]
        %v510 = vld [vmem:[%s450] sm:$0xff]
        %v511 = vld [vmem:[%s450 + $0x8] sm:$0xff]
        %p512 = scmp.eq.s32.totalorder %s506, %s507
        // Predicated region
        $region93: #{tpu_custom_call.1} parent=55 // pred_check
          %p513 = pneg %p512
        $region94: #{tpu_custom_call.1} parent=55 // pred_check_branch
          %515 = sbr.rel (%p513) target = $region96
        $region95: #{tpu_custom_call.1} parent=55 // pred_region
          %s516 = sld [smem:[#allocation10 + %s506]]
          %s517 = sld [smem:[#allocation11 + %s506]]
          %s518 = sld [smem:[#allocation13 + %s506]]
          %s519 = sld [smem:[#allocation14 + %s506]]
          %v520 = vstv %s517
          %v521 = vadd.f32 %v508, %v520
          %v522 = vadd.f32 %v509, %v520
          %v523 = vstv %s519
          %v524 = vmul.f32 %v523, %v508
          %v525 = vmul.f32 %v523, %v509
          %v526 = vstv %s518
          %v527 = vadd.f32 %v524, %v526
          %v528 = vadd.f32 %v525, %v526
          %v529 = vmul.f32 %v521, %v510
          %v530 = vmul.f32 %v522, %v511
          %v531 = vadd.f32 %v527, %v529
          %v532 = vadd.f32 %v528, %v530
          %v533 = vrcp.pop %v531
          %v534 = vrcp.pop %v532
          %v535 = vmul.f32 %v531, %v533
          %v536 = vmul.f32 %v532, %v534
          %v537 = vsub.f32 2.0, %v535
          %v538 = vsub.f32 2.0, %v536
          %v539 = vmul.f32 %v533, %v537
          %v540 = vmul.f32 %v534, %v538
          %v541 = vstv %s516
          %v542 = vmul.f32 %v541, %v521
          %v543 = vmul.f32 %v541, %v522
          %v544 = vmul.f32 %v542, %v539
          %v545 = vmul.f32 %v543, %v540
          %546 = vst [vmem:[%s490] sm:$0xff] %v544
          %547 = vst [vmem:[%s490 + $0x8] sm:$0xff] %v545
        $region96: #{tpu_custom_call.1} parent=55 // pred_fallthru
          _
        %p548 = scmp.ne.s32.totalorder %s506, %s507
        // Predicated region
        $region97: #{tpu_custom_call.1} parent=55 // pred_check
          %p549 = pneg %p548
        $region98: #{tpu_custom_call.1} parent=55 // pred_check_branch
          %551 = sbr.rel (%p549) target = $region100
        $region99: #{tpu_custom_call.1} parent=55 // pred_region
          %s552 = smul.u32 %s34, 2048
          %v553 = vlaneseq
          %v554 = vshrl.u32 %v553, 7
          %v555 = vadd.s32 %v554, 8
          %v556 = vlaneseq
          %v557 = vand.u32 %v556, 127
          %v558 = vmul.u32 %v554, 128
          %v559 = vmul.u32 %v555, 128
          %v560 = vstv %s552
          %v561 = vadd.s32 %v560, %v558
          %v562 = vadd.s32 %v560, %v559
          %v563 = vadd.s32 %v561, %v557
          %v564 = vadd.s32 %v562, %v557
          %s565 = sld [smem:[#allocation10]]
          %v566 = vstv %s565
          %s567 = sld [smem:[#allocation11]]
          %v568 = vstv %s567
          %s569 = sld [smem:[#allocation13]]
          %v570 = vstv %s569
          %s571 = sld [smem:[#allocation14]]
          %v572 = vstv %s571
          %s573 = sld [smem:[#allocation8 + $0x1]]
          %v574 = vstv %s573
          %vm575 = vcmp.ge.s32.totalorder %v563, %v574
          %vm576 = vcmp.ge.s32.totalorder %v564, %v574
          %s577 = sld [smem:[#allocation10 + $0x1]]
          %v578 = vstv %s577
          %v579 = vsel %vm575, %v578, %v566
          %v580 = vsel %vm576, %v578, %v566
          %s581 = sld [smem:[#allocation11 + $0x1]]
          %v582 = vstv %s581
          %v583 = vsel %vm575, %v582, %v568
          %v584 = vsel %vm576, %v582, %v568
          %s585 = sld [smem:[#allocation13 + $0x1]]
          %v586 = vstv %s585
          %v587 = vsel %vm575, %v586, %v570
          %v588 = vsel %vm576, %v586, %v570
          %s589 = sld [smem:[#allocation14 + $0x1]]
          %v590 = vstv %s589
          %v591 = vsel %vm575, %v590, %v572
          %v592 = vsel %vm576, %v590, %v572
          %s593 = sld [smem:[#allocation8 + $0x2]]
          %v594 = vstv %s593
          %vm595 = vcmp.ge.s32.totalorder %v563, %v594
          %vm596 = vcmp.ge.s32.totalorder %v564, %v594
          %s597 = sld [smem:[#allocation10 + $0x2]]
          %v598 = vstv %s597
          %v599 = vsel %vm595, %v598, %v579
          %v600 = vsel %vm596, %v598, %v580
          %s601 = sld [smem:[#allocation11 + $0x2]]
          %v602 = vstv %s601
          %v603 = vsel %vm595, %v602, %v583
          %v604 = vsel %vm596, %v602, %v584
          %s605 = sld [smem:[#allocation13 + $0x2]]
          %v606 = vstv %s605
          %v607 = vsel %vm595, %v606, %v587
          %v608 = vsel %vm596, %v606, %v588
          %s609 = sld [smem:[#allocation14 + $0x2]]
          %v610 = vstv %s609
          %v611 = vsel %vm595, %v610, %v591
          %v612 = vsel %vm596, %v610, %v592
          %s613 = sld [smem:[#allocation8 + $0x3]]
          %v614 = vstv %s613
          %vm615 = vcmp.ge.s32.totalorder %v563, %v614
          %vm616 = vcmp.ge.s32.totalorder %v564, %v614
          %s617 = sld [smem:[#allocation10 + $0x3]]
          %v618 = vstv %s617
          %v619 = vsel %vm615, %v618, %v599
          %v620 = vsel %vm616, %v618, %v600
          %s621 = sld [smem:[#allocation11 + $0x3]]
          %v622 = vstv %s621
          %v623 = vsel %vm615, %v622, %v603
          %v624 = vsel %vm616, %v622, %v604
          %s625 = sld [smem:[#allocation13 + $0x3]]
          %v626 = vstv %s625
          %v627 = vsel %vm615, %v626, %v607
          %v628 = vsel %vm616, %v626, %v608
          %s629 = sld [smem:[#allocation14 + $0x3]]
          %v630 = vstv %s629
          %v631 = vsel %vm615, %v630, %v611
          %v632 = vsel %vm616, %v630, %v612
          %s633 = sld [smem:[#allocation8 + $0x4]]
          %v634 = vstv %s633
          %vm635 = vcmp.ge.s32.totalorder %v563, %v634
          %vm636 = vcmp.ge.s32.totalorder %v564, %v634
          %s637 = sld [smem:[#allocation10 + $0x4]]
          %v638 = vstv %s637
          %v639 = vsel %vm635, %v638, %v619
          %v640 = vsel %vm636, %v638, %v620
          %s641 = sld [smem:[#allocation11 + $0x4]]
          %v642 = vstv %s641
          %v643 = vsel %vm635, %v642, %v623
          %v644 = vsel %vm636, %v642, %v624
          %s645 = sld [smem:[#allocation13 + $0x4]]
          %v646 = vstv %s645
          %v647 = vsel %vm635, %v646, %v627
          %v648 = vsel %vm636, %v646, %v628
          %s649 = sld [smem:[#allocation14 + $0x4]]
          %v650 = vstv %s649
          %v651 = vsel %vm635, %v650, %v631
          %v652 = vsel %vm636, %v650, %v632
          %v653 = vadd.f32 %v508, %v643
          %v654 = vadd.f32 %v509, %v644
          %v655 = vmul.f32 %v651, %v508
          %v656 = vmul.f32 %v652, %v509
          %v657 = vadd.f32 %v655, %v647
          %v658 = vadd.f32 %v656, %v648
          %v659 = vmul.f32 %v653, %v510
          %v660 = vmul.f32 %v654, %v511
          %v661 = vadd.f32 %v657, %v659
          %v662 = vadd.f32 %v658, %v660
          %v663 = vrcp.pop %v661
          %v664 = vrcp.pop %v662
          %v665 = vmul.f32 %v661, %v663
          %v666 = vmul.f32 %v662, %v664
          %v667 = vsub.f32 2.0, %v665
          %v668 = vsub.f32 2.0, %v666
          %v669 = vmul.f32 %v663, %v667
          %v670 = vmul.f32 %v664, %v668
          %v671 = vmul.f32 %v639, %v653
          %v672 = vmul.f32 %v640, %v654
          %v673 = vmul.f32 %v671, %v669
          %v674 = vmul.f32 %v672, %v670
          %675 = vst [vmem:[%s490] sm:$0xff] %v673
          %676 = vst [vmem:[%s490 + $0x8] sm:$0xff] %v674
        $region100: #{tpu_custom_call.1} parent=55 // pred_fallthru
          _
        %s677 = sand.u32 %s241, 1
        %s678 = scalar_lea.sflag [#allocation4], %s677
        %s679 = sand.u32 %s241, 1
        %s680 = smul.addr %s679, 16
        %s681 = scalar_lea.vmem [#allocation19], %s680
        // Predicated region
        $region101: #{tpu_custom_call.1} parent=55 // pred_check
          %p682 = pneg %p251
        $region102: #{tpu_custom_call.1} parent=55 // pred_check_branch
          %684 = sbr.rel (%p682) target = $region104
        $region103: #{tpu_custom_call.1} parent=55 // pred_region
          %s685 = smul.u32 2, %s34
          %s686 = ssub.s32 3, %s685
          %p687 = scmp.lt.s32.totalorder %s686, 2
          %s688 = scalar_select %p687, %s686, 2
          %s689 = smul.u32 128, %s688
          %s691 = ssub.s32 256, %s689
          %692 = vsyncadd %s678, %s691
          %p693 = scmp.ne.s32.totalorder 0, %s689
          %s694 = smul.addr %s685, 128
          %s695 = scalar_lea.hbm %s9, %s694
          %s696 = smul.u32 8, %s688
          %s697 = sshll.u32 %s681, 4
          %s698 = int_to_ptr.vmem [resolvable:$true] %s697
          %s699 = sshll.u32 %s696, 4
          %703 = dma.vmem_to_hbm [thread:$0]  (%p693), %s698, %s699, %s695, %s678, 128, 128, 8
        $region104: #{tpu_custom_call.1} parent=55 // pred_fallthru
          _
      $region56: #{tpu_custom_call.1} parent=5 // pred_fallthru
        _
      %p704 = scmp.le.s32.totalorder 2, %s29
      // Predicated region
      $region105: #{tpu_custom_call.1} parent=5 // pred_check
        %p705 = pneg %p704
      $region106: #{tpu_custom_call.1} parent=5 // pred_check_branch
        %707 = sbr.rel (%p705) target = $region108
      $region107: #{tpu_custom_call.1} parent=5 // pred_region
        %s708 = ssub.s32 %s29, 2
        // Predicated region
        $region109: #{tpu_custom_call.1} parent=107 // pred_check
          %p709 = pneg %p257
        $region110: #{tpu_custom_call.1} parent=107 // pred_check_branch
          %711 = sbr.rel (%p709) target = $region112
        $region111: #{tpu_custom_call.1} parent=107 // pred_region
          %s712 = sand.u32 %s242, 1
          %s713 = scalar_lea.sflag [#allocation4], %s712
          %s714 = sand.u32 %s242, 1
          %s715 = smul.addr %s714, 16
          %s716 = scalar_lea.vmem [#allocation19], %s715
          %717 = dma.done %s713, 256
        $region112: #{tpu_custom_call.1} parent=107 // pred_fallthru
          _
      $region108: #{tpu_custom_call.1} parent=5 // pred_fallthru
        _
    $region6: #{tpu_custom_call.1} parent=1 // loop_footer
      %s33 = sadd.s32 1, %s29
    $region7: #{tpu_custom_call.1} parent=1 // loop_footer_branch
      %28 = sbr.rel target = $region3
    $region8: #{tpu_custom_call.1} parent=1 // loop_exit
      _
    %718 = vsyncpa [#allocation3], 1
    %s719 = scalar_lea.sflag [#allocation3], 1
    %720 = vsyncpa %s719, 1
    %721 = vsyncpa [#allocation18], 1
    %s722 = scalar_lea.sflag [#allocation18], 1
    %723 = vsyncpa %s722, 1
    %724 = vsyncpa [#allocation4], 1
    %s725 = scalar_lea.sflag [#allocation4], 1
    %726 = vsyncpa %s725, 1
    %727 = vsyncpa [#allocation5], 1
    %s728 = scalar_lea.sflag [#allocation5], 1
    %729 = vsyncpa %s728, 1
    %730 = vsyncpa [#allocation6], 1
    %s731 = scalar_lea.sflag [#allocation6], 1
    %732 = vsyncpa %s731, 1
    %733 = vsyncpa [#allocation9], 1
    %734 = vsyncpa [#allocation12], 1
    %735 = vsyncpa [#allocation15], 1

</llo_original>
